<compile_context>
chip_gen: v5e
topology: v5e:2x2
jax: 0.10.0
libtpu: 0.0.40
codegen_flags: <defaults>
</compile_context>

<pallas_src>
import jax
import jax.numpy as jnp
from jax.experimental import pallas as pl
from jax.experimental.pallas import tpu as pltpu

N_NODES = 16
F_IN, H1, H2, H3, F1, F_OUT = 3, 64, 128, 128, 64, 2
PAD = 128                     # lane-padded max output width
KPAD0 = 16                    # layer-0 K padded to a bf16 sublane tile
N_LAYERS = 5
N_DROP = 3

# Per-layer K extents and offsets inside the K-packed weight slab.
K_DIMS = (KPAD0, H1, H2, H3, F1)                       # (16, 64, 128, 128, 64)
K_OFF = tuple(int(sum(K_DIMS[:i])) for i in range(N_LAYERS))   # (0,16,80,208,336)
K_TOTAL = int(sum(K_DIMS))                             # 400


# ------------------------------- kernel body ---------------------------------

def _forward(a_ref, x_ref, w_ref, b_ref, out_ref, m_ref):
    a = a_ref[...]                                 # (N, N) f32 normalized adjacency

    def xw(h, l, n):
        # Feature transform on the MXU: bf16 operands, f32 accumulation.
        w = w_ref[K_OFF[l]:K_OFF[l] + K_DIMS[l], :n]
        return jnp.dot(h.astype(jnp.bfloat16), w,
                       preferred_element_type=jnp.float32)

    def gcn(h, l, n):
        # (A_hat @ h) @ W + b : aggregation in full f32 (precision), then bf16
        # feature transform.  Mathematically identical to A_hat @ (h @ W) + b.
        ah = jnp.dot(a, h, preferred_element_type=jnp.float32)
        return xw(ah, l, n) + b_ref[l, :, :n]

    def drop(h, l, n):
        # Static Python branch: the inference kernel has no mask operand and
        # no multiplies at all.  Mask values are {0, 2} (p=0.5, scale 1/(1-p)).
        if m_ref is None:
            return h
        return h * m_ref[l, :, :n].astype(jnp.float32)

    h = x_ref[...]                                           # (N, 16) f32
    h = drop(jnp.maximum(gcn(h, 0, H1), 0.0), 0, H1)          # (N, 64)
    h = drop(jnp.maximum(gcn(h, 1, H2), 0.0), 1, H2)          # (N, 128)
    h = drop(jnp.maximum(gcn(h, 2, H3), 0.0), 2, H3)          # (N, 128)
    h = jnp.maximum(xw(h, 3, F1) + b_ref[3, :, :F1], 0.0)     # (N, 64)
    out_ref[...] = xw(h, 4, PAD) + b_ref[4, :, :PAD]          # (N, 128) lane-dense


def _gnn_kernel_train(a_ref, x_ref, w_ref, b_ref, m_ref, out_ref):
    _forward(a_ref, x_ref, w_ref, b_ref, out_ref, m_ref)


def _gnn_kernel_infer(a_ref, x_ref, w_ref, b_ref, out_ref):
    _forward(a_ref, x_ref, w_ref, b_ref, out_ref, None)


# --------------------------------- wrapper -----------------------------------

def run_gnn(x_batch, a_hat, w_slab, b_slab, *, dropout_key=None):
    """Batched forward. x_batch: (B, N, F_IN). dropout_key=None -> inference."""
    B, n, f = x_batch.shape
    x_p = jnp.zeros((B, n, KPAD0), jnp.float32).at[:, :, :f].set(x_batch)

    # Weights/bias/adjacency: index_map returns block 0 every step -> resident
    # in VMEM, DMA'd once.  x / mask / out are blocked per graph (batch dim
    # squeezed out of the kernel refs).
    a_spec = pl.BlockSpec((n, n), lambda b: (0, 0))
    x_spec = pl.BlockSpec((None, n, KPAD0), lambda b: (b, 0, 0))
    w_spec = pl.BlockSpec((K_TOTAL, PAD), lambda b: (0, 0))
    bias_spec = pl.BlockSpec((N_LAYERS, 1, PAD), lambda b: (0, 0, 0))
    out_spec = pl.BlockSpec((None, n, PAD), lambda b: (b, 0, 0))

    args = [a_hat.astype(jnp.float32), x_p, w_slab, b_slab]
    in_specs = [a_spec, x_spec, w_spec, bias_spec]

    if dropout_key is not None:
        keep = jax.random.bernoulli(dropout_key, 0.5, (B, N_DROP, n, PAD))
        mask = jnp.where(keep, 2.0, 0.0).astype(jnp.bfloat16)   # {0, 2}, bf16 DMA
        args.append(mask)
        in_specs.append(pl.BlockSpec((None, N_DROP, n, PAD),
                                     lambda b: (b, 0, 0, 0)))
        kernel = _gnn_kernel_train
    else:
        kernel = _gnn_kernel_infer

    flops_per_graph = 2 * (n * n * KPAD0 + n * KPAD0 * H1 +   # GCN 1
                           n * n * H1 + n * H1 * H2 +         # GCN 2
                           n * n * H2 + n * H2 * H3 +         # GCN 3
                           n * H3 * F1 +                      # FC 1
                           n * F1 * PAD)                      # FC 2 (lane-padded)
    bytes_accessed = (sum(int(a.size) * a.dtype.itemsize for a in args)
                      + B * n * PAD * 4)

    out = pl.pallas_call(
        kernel,
        grid=(B,),
        in_specs=in_specs,
        out_specs=out_spec,
        out_shape=jax.ShapeDtypeStruct((B, n, PAD), jnp.float32),
        compiler_params=pltpu.CompilerParams(
            dimension_semantics=("parallel",)),       # megacore shard on v7x
        cost_estimate=pl.CostEstimate(flops=B * flops_per_graph,
                                      transcendentals=0,
                                      bytes_accessed=bytes_accessed),
    )(*args)
    return out[:, :, :F_OUT]


# ----------------------- plain-JAX glue: params & graph -----------------------

def init_raw_params(key):
    dims = [(F_IN, H1), (H1, H2), (H2, H3), (H3, F1), (F1, F_OUT)]
    keys = jax.random.split(key, len(dims))
    params = []
    for k, (fi, fo) in zip(keys, dims):
        w = jax.random.normal(k, (fi, fo), jnp.float32) / jnp.sqrt(float(fi))
        b = jnp.zeros((fo,), jnp.float32)
        params.append((w, b))
    return params


def pack_params(raw):
    """Pack all 5 layers along K into one bf16 slab + one f32 bias slab."""
    w_slab = jnp.zeros((K_TOTAL, PAD), jnp.float32)
    b_slab = jnp.zeros((N_LAYERS, 1, PAD), jnp.float32)
    for l, (w, b) in enumerate(raw):
        fi, fo = w.shape
        assert fi <= K_DIMS[l] and fo <= PAD, "layer does not fit packed slab"
        w_slab = w_slab.at[K_OFF[l]:K_OFF[l] + fi, :fo].set(w)
        b_slab = b_slab.at[l, 0, :fo].set(b)
    return w_slab.astype(jnp.bfloat16), b_slab


def build_a_hat(n, edges):
    a = jnp.zeros((n, n), jnp.float32)
    for i, j in edges:
        a = a.at[i, j].set(1.0).at[j, i].set(1.0)
    a = a + jnp.eye(n, dtype=jnp.float32)            # add self-loops
    dinv = 1.0 / jnp.sqrt(a.sum(axis=1))
    return dinv[:, None] * a * dinv[None, :]         # D^{-1/2}(A+I)D^{-1/2}


def ref_forward(x, a_hat, raw_params):
    # Pure-JAX f32 reference, dropout disabled (correctness check only).
    (w1, b1), (w2, b2), (w3, b3), (wf1, bf1), (wf2, bf2) = raw_params
    h = jnp.maximum(a_hat @ (x @ w1) + b1, 0.0)
    h = jnp.maximum(a_hat @ (h @ w2) + b2, 0.0)
    h = jnp.maximum(a_hat @ (h @ w3) + b3, 0.0)
    h = jnp.maximum(h @ wf1 + bf1, 0.0)
    return h @ wf2 + bf2


if __name__ == "__main__":
    key = jax.random.PRNGKey(0)
    k_x, k_p, k_d = jax.random.split(key, 3)

    # Deterministic small graph: ring + chords over 16 nodes.
    # TODO(synk): the original script builds the graph with networkx / PyG Data;
    # here the edge list is built in-script and edge_attr is unused (as in the
    # module's forward).
    edges = [(i, (i + 1) % N_NODES) for i in range(N_NODES)]
    edges += [(i, (i + 5) % N_NODES) for i in range(0, N_NODES, 2)]
    a_hat = build_a_hat(N_NODES, edges)

    # Minibatch of graphs sharing the adjacency (original used zeros(N,3);
    # random features are a stricter numerical test).
    B = 8
    x_batch = jax.random.normal(k_x, (B, N_NODES, F_IN), jnp.float32)

    raw_params = init_raw_params(k_p)
    w_slab, b_slab = pack_params(raw_params)

    # 1) correctness: inference kernel (no dropout) vs pure-JAX f32 reference.
    #    Weights are bf16 in the kernel (adjacency stays f32), so tolerance is
    #    mildly relaxed.
    out_eval = run_gnn(x_batch, a_hat, w_slab, b_slab)
    out_ref = jax.vmap(lambda xx: ref_forward(xx, a_hat, raw_params))(x_batch)
    assert out_eval.shape == (B, N_NODES, F_OUT)
    assert jnp.allclose(out_eval, out_ref, atol=5e-2, rtol=5e-2), \
        "mismatch vs reference"

    # 2) forward as written in the module (dropout active, p=0.5).
    out_train = run_gnn(x_batch, a_hat, w_slab, b_slab, dropout_key=k_d)
    jax.block_until_ready(out_train)
    assert out_train.shape == (B, N_NODES, F_OUT)
    assert bool(jnp.all(jnp.isfinite(out_train)))

    print("KERNEL_OK")
</pallas_src>

<mosaic_0001>
module attributes {stable_mosaic.version = 11 : i64} {
  func.func @_gnn_kernel_infer(%arg0: i32, %arg1: memref<16x16xf32, #tpu.memory_space<vmem>>, %arg2: memref<1x16x16xf32, #tpu.memory_space<vmem>>, %arg3: memref<400x128xbf16, #tpu.memory_space<vmem>>, %arg4: memref<5x1x128xf32, #tpu.memory_space<vmem>>, %arg5: memref<1x16x128xf32, #tpu.memory_space<vmem>>) attributes {dimension_semantics = [#tpu.dimension_semantics<parallel>], iteration_bounds = array<i64: 8>, scalar_prefetch = 0 : i64, scratch_operands = 0 : i64, tpu.core_type = #tpu.core_type<tc>, window_params = [{pipeline_mode = #tpu.pipeline_mode<synchronous>, transform_indices = @transform_0, window_bounds = array<i64: 16, 16>}, {transform_indices = @transform_1, window_bounds = array<i64: 1, 16, 16>}, {pipeline_mode = #tpu.pipeline_mode<synchronous>, transform_indices = @transform_2, window_bounds = array<i64: 400, 128>}, {pipeline_mode = #tpu.pipeline_mode<synchronous>, transform_indices = @transform_3, window_bounds = array<i64: 5, 1, 128>}, {transform_indices = @transform_4, window_bounds = array<i64: 1, 16, 128>}]} {
    %c0 = arith.constant 0 : index
    %c0_0 = arith.constant 0 : index
    %0 = vector.load %arg1[%c0, %c0_0] : memref<16x16xf32, #tpu.memory_space<vmem>>, vector<16x16xf32>
    %c0_1 = arith.constant 0 : index
    %c0_2 = arith.constant 0 : index
    %c0_3 = arith.constant 0 : index
    %1 = vector.load %arg2[%c0_1, %c0_2, %c0_3] : memref<1x16x16xf32, #tpu.memory_space<vmem>>, vector<1x16x16xf32>
    %2 = vector.shape_cast %1 : vector<1x16x16xf32> to vector<16x16xf32>
    %cst = arith.constant dense<0.000000e+00> : vector<16x16xf32>
    %3 = tpu.matmul %0, %2, %cst {dimension_numbers = #tpu.dot_dimension_numbers<[1], [0], [0], [1], [0, 0, 1, 1], [], []>} : vector<16x16xf32>, vector<16x16xf32>, vector<16x16xf32> -> vector<16x16xf32>
    %c0_4 = arith.constant 0 : index
    %c0_5 = arith.constant 0 : index
    %4 = vector.load %arg3[%c0_4, %c0_5] : memref<400x128xbf16, #tpu.memory_space<vmem>>, vector<16x64xbf16>
    %5 = arith.truncf %3 : vector<16x16xf32> to vector<16x16xbf16>
    %cst_6 = arith.constant dense<0.000000e+00> : vector<16x64xf32>
    %6 = tpu.matmul %5, %4, %cst_6 {dimension_numbers = #tpu.dot_dimension_numbers<[1], [0], [0], [1], [0, 0, 1, 1], [], []>} : vector<16x16xbf16>, vector<16x64xbf16>, vector<16x64xf32> -> vector<16x64xf32>
    %c0_7 = arith.constant 0 : index
    %c0_8 = arith.constant 0 : index
    %c0_9 = arith.constant 0 : index
    %7 = vector.load %arg4[%c0_7, %c0_8, %c0_9] : memref<5x1x128xf32, #tpu.memory_space<vmem>>, vector<1x1x64xf32>
    %8 = vector.shape_cast %7 : vector<1x1x64xf32> to vector<1x64xf32>
    %9 = vector.broadcast %8 : vector<1x64xf32> to vector<16x64xf32>
    %10 = arith.addf %6, %9 : vector<16x64xf32>
    %cst_10 = arith.constant 0.000000e+00 : f32
    %11 = vector.broadcast %cst_10 : f32 to vector<16x64xf32>
    %12 = arith.maximumf %10, %11 : vector<16x64xf32>
    %cst_11 = arith.constant dense<0.000000e+00> : vector<16x64xf32>
    %13 = tpu.matmul %0, %12, %cst_11 {dimension_numbers = #tpu.dot_dimension_numbers<[1], [0], [0], [1], [0, 0, 1, 1], [], []>} : vector<16x16xf32>, vector<16x64xf32>, vector<16x64xf32> -> vector<16x64xf32>
    %c16 = arith.constant 16 : index
    %c0_12 = arith.constant 0 : index
    %14 = vector.load %arg3[%c16, %c0_12] : memref<400x128xbf16, #tpu.memory_space<vmem>>, vector<64x128xbf16>
    %15 = arith.truncf %13 : vector<16x64xf32> to vector<16x64xbf16>
    %cst_13 = arith.constant dense<0.000000e+00> : vector<16x128xf32>
    %16 = tpu.matmul %15, %14, %cst_13 {dimension_numbers = #tpu.dot_dimension_numbers<[1], [0], [0], [1], [0, 0, 1, 1], [], []>} : vector<16x64xbf16>, vector<64x128xbf16>, vector<16x128xf32> -> vector<16x128xf32>
    %c1 = arith.constant 1 : index
    %c0_14 = arith.constant 0 : index
    %c0_15 = arith.constant 0 : index
    %17 = vector.load %arg4[%c1, %c0_14, %c0_15] : memref<5x1x128xf32, #tpu.memory_space<vmem>>, vector<1x1x128xf32>
    %18 = vector.shape_cast %17 : vector<1x1x128xf32> to vector<1x128xf32>
    %19 = vector.broadcast %18 : vector<1x128xf32> to vector<16x128xf32>
    %20 = arith.addf %16, %19 : vector<16x128xf32>
    %cst_16 = arith.constant 0.000000e+00 : f32
    %21 = vector.broadcast %cst_16 : f32 to vector<16x128xf32>
    %22 = arith.maximumf %20, %21 : vector<16x128xf32>
    %cst_17 = arith.constant dense<0.000000e+00> : vector<16x128xf32>
    %23 = tpu.matmul %0, %22, %cst_17 {dimension_numbers = #tpu.dot_dimension_numbers<[1], [0], [0], [1], [0, 0, 1, 1], [], []>} : vector<16x16xf32>, vector<16x128xf32>, vector<16x128xf32> -> vector<16x128xf32>
    %c80 = arith.constant 80 : index
    %c0_18 = arith.constant 0 : index
    %24 = vector.load %arg3[%c80, %c0_18] : memref<400x128xbf16, #tpu.memory_space<vmem>>, vector<128x128xbf16>
    %25 = arith.truncf %23 : vector<16x128xf32> to vector<16x128xbf16>
    %cst_19 = arith.constant dense<0.000000e+00> : vector<16x128xf32>
    %26 = tpu.matmul %25, %24, %cst_19 {dimension_numbers = #tpu.dot_dimension_numbers<[1], [0], [0], [1], [0, 0, 1, 1], [], []>} : vector<16x128xbf16>, vector<128x128xbf16>, vector<16x128xf32> -> vector<16x128xf32>
    %c2 = arith.constant 2 : index
    %c0_20 = arith.constant 0 : index
    %c0_21 = arith.constant 0 : index
    %27 = vector.load %arg4[%c2, %c0_20, %c0_21] : memref<5x1x128xf32, #tpu.memory_space<vmem>>, vector<1x1x128xf32>
    %28 = vector.shape_cast %27 : vector<1x1x128xf32> to vector<1x128xf32>
    %29 = vector.broadcast %28 : vector<1x128xf32> to vector<16x128xf32>
    %30 = arith.addf %26, %29 : vector<16x128xf32>
    %cst_22 = arith.constant 0.000000e+00 : f32
    %31 = vector.broadcast %cst_22 : f32 to vector<16x128xf32>
    %32 = arith.maximumf %30, %31 : vector<16x128xf32>
    %c208 = arith.constant 208 : index
    %c0_23 = arith.constant 0 : index
    %33 = vector.load %arg3[%c208, %c0_23] : memref<400x128xbf16, #tpu.memory_space<vmem>>, vector<128x64xbf16>
    %34 = arith.truncf %32 : vector<16x128xf32> to vector<16x128xbf16>
    %cst_24 = arith.constant dense<0.000000e+00> : vector<16x64xf32>
    %35 = tpu.matmul %34, %33, %cst_24 {dimension_numbers = #tpu.dot_dimension_numbers<[1], [0], [0], [1], [0, 0, 1, 1], [], []>} : vector<16x128xbf16>, vector<128x64xbf16>, vector<16x64xf32> -> vector<16x64xf32>
    %c3 = arith.constant 3 : index
    %c0_25 = arith.constant 0 : index
    %c0_26 = arith.constant 0 : index
    %36 = vector.load %arg4[%c3, %c0_25, %c0_26] : memref<5x1x128xf32, #tpu.memory_space<vmem>>, vector<1x1x64xf32>
    %37 = vector.shape_cast %36 : vector<1x1x64xf32> to vector<1x64xf32>
    %38 = vector.broadcast %37 : vector<1x64xf32> to vector<16x64xf32>
    %39 = arith.addf %35, %38 : vector<16x64xf32>
    %cst_27 = arith.constant 0.000000e+00 : f32
    %40 = vector.broadcast %cst_27 : f32 to vector<16x64xf32>
    %41 = arith.maximumf %39, %40 : vector<16x64xf32>
    %c336 = arith.constant 336 : index
    %c0_28 = arith.constant 0 : index
    %42 = vector.load %arg3[%c336, %c0_28] : memref<400x128xbf16, #tpu.memory_space<vmem>>, vector<64x128xbf16>
    %43 = arith.truncf %41 : vector<16x64xf32> to vector<16x64xbf16>
    %cst_29 = arith.constant dense<0.000000e+00> : vector<16x128xf32>
    %44 = tpu.matmul %43, %42, %cst_29 {dimension_numbers = #tpu.dot_dimension_numbers<[1], [0], [0], [1], [0, 0, 1, 1], [], []>} : vector<16x64xbf16>, vector<64x128xbf16>, vector<16x128xf32> -> vector<16x128xf32>
    %c4 = arith.constant 4 : index
    %c0_30 = arith.constant 0 : index
    %c0_31 = arith.constant 0 : index
    %45 = vector.load %arg4[%c4, %c0_30, %c0_31] : memref<5x1x128xf32, #tpu.memory_space<vmem>>, vector<1x1x128xf32>
    %46 = vector.shape_cast %45 : vector<1x1x128xf32> to vector<1x128xf32>
    %47 = vector.broadcast %46 : vector<1x128xf32> to vector<16x128xf32>
    %48 = arith.addf %44, %47 : vector<16x128xf32>
    %c0_32 = arith.constant 0 : index
    %c0_33 = arith.constant 0 : index
    %c0_34 = arith.constant 0 : index
    %49 = vector.load %arg5[%c0_32, %c0_33, %c0_34] : memref<1x16x128xf32, #tpu.memory_space<vmem>>, vector<1x16x128xf32>
    %50 = vector.shape_cast %49 : vector<1x16x128xf32> to vector<16x128xf32>
    %51 = vector.shape_cast %48 : vector<16x128xf32> to vector<1x16x128xf32>
    tpu.vector_store %arg5[%c0_32, %c0_33, %c0_34], %51 {strides = array<i32>} : memref<1x16x128xf32, #tpu.memory_space<vmem>>, vector<1x16x128xf32>,
    return
  }
  func.func @transform_0(%arg0: i32) -> (i32, i32) {
    %c0_i32 = arith.constant 0 : i32
    %c0_i32_0 = arith.constant 0 : i32
    %c0_i32_1 = arith.constant 0 : i32
    return %c0_i32, %c0_i32_0 : i32, i32
  }
  func.func @transform_1(%arg0: i32) -> (i32, i32, i32) {
    %c0_i32 = arith.constant 0 : i32
    %c0_i32_0 = arith.constant 0 : i32
    %c0_i32_1 = arith.constant 0 : i32
    return %arg0, %c0_i32, %c0_i32_0 : i32, i32, i32
  }
  func.func @transform_2(%arg0: i32) -> (i32, i32) {
    %c0_i32 = arith.constant 0 : i32
    %c0_i32_0 = arith.constant 0 : i32
    %c0_i32_1 = arith.constant 0 : i32
    return %c0_i32, %c0_i32_0 : i32, i32
  }
  func.func @transform_3(%arg0: i32) -> (i32, i32, i32) {
    %c0_i32 = arith.constant 0 : i32
    %c0_i32_0 = arith.constant 0 : i32
    %c0_i32_1 = arith.constant 0 : i32
    %c0_i32_2 = arith.constant 0 : i32
    return %c0_i32, %c0_i32_0, %c0_i32_1 : i32, i32, i32
  }
  func.func @transform_4(%arg0: i32) -> (i32, i32, i32) {
    %c0_i32 = arith.constant 0 : i32
    %c0_i32_0 = arith.constant 0 : i32
    %c0_i32_1 = arith.constant 0 : i32
    return %arg0, %c0_i32, %c0_i32_0 : i32, i32, i32
  }
}

</mosaic_0001>

<llo_original>
// kernel: tpu_custom_call.1
$region0: #{tpu_custom_call.1}
  #allocation0 [shape = 'u32[]', space=smem, size = 0x4, offset = 0x4, fixed_abs, tag = 'smem constant byte address 0x4 - core index']
  #allocation1 [shape = 'u32[72,128]{1,0:T(1,128)}', space=vmem, size = 0x9000, scoped, tag = 'internal scratch']
  %s0 = inlined_call_operand.hbm [shape: f32[16,16], index: 0, kind: input, shape index: {}]
  %s1 = inlined_call_operand.hbm [shape: f32[8,16,16], index: 1, kind: input, shape index: {}]
  %s2 = inlined_call_operand.hbm [shape: bf16[400,128], index: 2, kind: input, shape index: {}]
  %s3 = inlined_call_operand.hbm [shape: f32[5,1,128], index: 3, kind: input, shape index: {}]
  %s4 = inlined_call_operand.hbm [shape: f32[8,16,128], index: 4, kind: output, shape index: {}]
  %s5 = sld [smem:[#allocation0]]
  $region65: #{tpu_custom_call.1} parent=0
    _
  %s7 = ssub.s32 1, %s5
  %s8 = scalar_select 0, %s7, %s5
  $region1: #{tpu_custom_call.1} parent=0
    #allocation2 [shape = 'u8[8192]{0}', space=vmem, size = 0x2000, scoped, tag = 'input window, operand 0, single buffered']
    #allocation3 [shape = 's32[2]{0}', space=sflag, size = 0x8, scoped, tag = 'scoped memory for tpu_custom_call.1']
    #allocation4 [shape = 's32[2]{0}', space=sflag, size = 0x8, scoped, tag = 'scoped memory for tpu_custom_call.1']
    #allocation5 [shape = 'u8[16384]{0}', space=vmem, size = 0x4000, scoped, tag = 'input window, operand 1']
    #allocation6 [shape = 's32[2]{0}', space=sflag, size = 0x8, scoped, tag = 'scoped memory for tpu_custom_call.1']
    #allocation7 [shape = 'u8[102400]{0}', space=vmem, size = 0x19000, scoped, tag = 'input window, operand 2, single buffered']
    #allocation8 [shape = 'u8[2560]{0}', space=vmem, size = 0xc00, scoped, tag = 'input window, operand 3, single buffered']
    #allocation9 [shape = 's32[1]{0}', space=sflag, size = 0x4, scoped, tag = 'scoped memory for tpu_custom_call.1']
    #allocation10 [shape = 'u8[16384]{0}', space=vmem, size = 0x4000, scoped, tag = 'output window, operand 0']
    %9 = vsyncpa [#allocation3], 0
    %10 = vsyncpa [#allocation6], 0
    %s11 = scalar_lea.sflag [#allocation6], 1
    %12 = vsyncpa %s11, 0
    %13 = vsyncpa [#allocation9], 0
    %14 = vsyncpa [#allocation4], 0
    %s15 = scalar_lea.sflag [#allocation4], 1
    %16 = vsyncpa %s15, 0
    loop: start=0, step=1, limit=10
    $region2: #{tpu_custom_call.1} parent=1 // loop_pre_header
      _
    $region3: #{tpu_custom_call.1} parent=1 // loop_header
      %s18 = sphi 0, %s22
      %p19 = scmp.ge.s32.totalorder %s18, 10
      %s26 = sphi 0, %s26
      %s28 = sphi 0, %s26
      %s29 = sphi 0, %s28
      %s43 = sphi 0, %s29
      %s49 = sphi 0, %s51
      %s52 = sphi 0, %s49
      %s53 = sphi 0, %s52
      %s69 = sphi 0, %s53
      %s73 = sphi 0, %s73
      %s75 = sphi 0, %s73
      %s76 = sphi 0, %s75
      %s90 = sphi 0, %s76
      %s94 = sphi 0, %s94
      %s96 = sphi 0, %s94
      %s97 = sphi 0, %s96
      %s111 = sphi 0, %s97
      %s117 = sphi 0, %s119
      %s120 = sphi 0, %s117
      %s121 = sphi 0, %s120
      %s137 = sphi 0, %s121
    $region4: #{tpu_custom_call.1} parent=1 // loop_header_branch
      %21 = sbr.rel (%p19) target = $region8
    $region5: #{tpu_custom_call.1} parent=1 // loop_body
      %s23 = ssub.s32 %s18, 1
      %s24 = ssub.s32 %s18, 2
      %s25 = sadd.s32 %s18, 1
      %s27 = sadd.s32 %s26, 1
      %p30 = scmp.eq.s32.totalorder %s18, 7
      %p31 = scmp.ne.s32.totalorder %s26, %s28
      %p32 = scmp.eq.s32.totalorder %s18, 0
      %p33 = por %p31, %p32
      %p34 = scmp.ne.s32.totalorder %s26, %s28
      %p35 = scmp.eq.s32.totalorder %s23, 7
      %p36 = por %p34, %p35
      %p37 = scmp.ne.s32.totalorder %s28, %s29
      %p38 = scmp.eq.s32.totalorder %s23, 0
      %p39 = por %p37, %p38
      %p40 = scmp.ne.s32.totalorder %s28, %s29
      %p41 = scmp.eq.s32.totalorder %s24, 7
      %p42 = por %p40, %p41
      %p44 = scmp.ne.s32.totalorder %s29, %s43
      %p45 = scmp.eq.s32.totalorder %s24, 0
      %p46 = por %p44, %p45
      %s47 = ssub.s32 %s18, %s25
      %p48 = scmp.eq.s32.totalorder %s47, 0
      %s50 = sadd.s32 %s49, 1
      %s51 = scalar_select %p48, %s49, %s50
      %p54 = pneg %p48
      %p55 = scmp.eq.s32.totalorder %s18, 7
      %p56 = por %p54, %p55
      %p57 = scmp.ne.s32.totalorder %s49, %s52
      %p58 = scmp.eq.s32.totalorder %s18, 0
      %p59 = por %p57, %p58
      %p60 = scmp.ne.s32.totalorder %s49, %s52
      %p61 = scmp.eq.s32.totalorder %s23, 7
      %p62 = por %p60, %p61
      %p63 = scmp.ne.s32.totalorder %s52, %s53
      %p64 = scmp.eq.s32.totalorder %s23, 0
      %p65 = por %p63, %p64
      %p66 = scmp.ne.s32.totalorder %s52, %s53
      %p67 = scmp.eq.s32.totalorder %s24, 7
      %p68 = por %p66, %p67
      %p70 = scmp.ne.s32.totalorder %s53, %s69
      %p71 = scmp.eq.s32.totalorder %s24, 0
      %p72 = por %p70, %p71
      %s74 = sadd.s32 %s73, 1
      %p77 = scmp.eq.s32.totalorder %s18, 7
      %p78 = scmp.ne.s32.totalorder %s73, %s75
      %p79 = scmp.eq.s32.totalorder %s18, 0
      %p80 = por %p78, %p79
      %p81 = scmp.ne.s32.totalorder %s73, %s75
      %p82 = scmp.eq.s32.totalorder %s23, 7
      %p83 = por %p81, %p82
      %p84 = scmp.ne.s32.totalorder %s75, %s76
      %p85 = scmp.eq.s32.totalorder %s23, 0
      %p86 = por %p84, %p85
      %p87 = scmp.ne.s32.totalorder %s75, %s76
      %p88 = scmp.eq.s32.totalorder %s24, 7
      %p89 = por %p87, %p88
      %p91 = scmp.ne.s32.totalorder %s76, %s90
      %p92 = scmp.eq.s32.totalorder %s24, 0
      %p93 = por %p91, %p92
      %s95 = sadd.s32 %s94, 1
      %p98 = scmp.eq.s32.totalorder %s18, 7
      %p99 = scmp.ne.s32.totalorder %s94, %s96
      %p100 = scmp.eq.s32.totalorder %s18, 0
      %p101 = por %p99, %p100
      %p102 = scmp.ne.s32.totalorder %s94, %s96
      %p103 = scmp.eq.s32.totalorder %s23, 7
      %p104 = por %p102, %p103
      %p105 = scmp.ne.s32.totalorder %s96, %s97
      %p106 = scmp.eq.s32.totalorder %s23, 0
      %p107 = por %p105, %p106
      %p108 = scmp.ne.s32.totalorder %s96, %s97
      %p109 = scmp.eq.s32.totalorder %s24, 7
      %p110 = por %p108, %p109
      %p112 = scmp.ne.s32.totalorder %s97, %s111
      %p113 = scmp.eq.s32.totalorder %s24, 0
      %p114 = por %p112, %p113
      %s115 = ssub.s32 %s18, %s25
      %p116 = scmp.eq.s32.totalorder %s115, 0
      %s118 = sadd.s32 %s117, 1
      %s119 = scalar_select %p116, %s117, %s118
      %p122 = pneg %p116
      %p123 = scmp.eq.s32.totalorder %s18, 7
      %p124 = por %p122, %p123
      %p125 = scmp.ne.s32.totalorder %s117, %s120
      %p126 = scmp.eq.s32.totalorder %s18, 0
      %p127 = por %p125, %p126
      %p128 = scmp.ne.s32.totalorder %s117, %s120
      %p129 = scmp.eq.s32.totalorder %s23, 7
      %p130 = por %p128, %p129
      %p131 = scmp.ne.s32.totalorder %s120, %s121
      %p132 = scmp.eq.s32.totalorder %s23, 0
      %p133 = por %p131, %p132
      %p134 = scmp.ne.s32.totalorder %s120, %s121
      %p135 = scmp.eq.s32.totalorder %s24, 7
      %p136 = por %p134, %p135
      %p138 = scmp.ne.s32.totalorder %s121, %s137
      %p139 = scmp.eq.s32.totalorder %s24, 0
      %p140 = por %p138, %p139
      %p141 = scmp.le.s32.totalorder 1, %s18
      %p142 = scmp.lt.s32.totalorder %s18, 9
      %p143 = pnand %p141, %p142
      %p144 = pneg %p143
      // Predicated region
      $region9: #{tpu_custom_call.1} parent=5 // pred_check
        _
      $region10: #{tpu_custom_call.1} parent=5 // pred_check_branch
        %146 = sbr.rel (%p143) target = $region12
      $region11: #{tpu_custom_call.1} parent=5 // pred_region
        %s147 = ssub.s32 %s18, 1
        // Predicated region
        $region13: #{tpu_custom_call.1} parent=11 // pred_check
          %p148 = pneg %p39
        $region14: #{tpu_custom_call.1} parent=11 // pred_check_branch
          %150 = sbr.rel (%p148) target = $region16
        $region15: #{tpu_custom_call.1} parent=11 // pred_region
          %152 = vsyncadd [#allocation3], 0
          %s153 = sshll.u32 %s0, 4
          %s154 = int_to_ptr.hbm [resolvable:$true] %s153
          %s155 = sshll.u32 [#allocation2], 4
          %s156 = int_to_ptr.vmem [resolvable:$true] %s155
          %161 = dma.hbm_to_vmem [thread:$0]  %s154, 256, %s156, [#allocation3], 128, 128, 8
        $region16: #{tpu_custom_call.1} parent=11 // pred_fallthru
          _
        // Predicated region
        $region17: #{tpu_custom_call.1} parent=11 // pred_check
          %p162 = pneg %p86
        $region18: #{tpu_custom_call.1} parent=11 // pred_check_branch
          %164 = sbr.rel (%p162) target = $region20
        $region19: #{tpu_custom_call.1} parent=11 // pred_region
          %166 = vsyncadd [#allocation6], 0
          %s167 = sshll.u32 %s2, 4
          %s168 = int_to_ptr.hbm [resolvable:$true] %s167
          %s169 = sshll.u32 [#allocation7], 4
          %s170 = int_to_ptr.vmem [resolvable:$true] %s169
          %175 = dma.hbm_to_vmem [thread:$0]  %s168, 3200, %s170, [#allocation6], 64, 64, 4
        $region20: #{tpu_custom_call.1} parent=11 // pred_fallthru
          _
        // Predicated region
        $region21: #{tpu_custom_call.1} parent=11 // pred_check
          %p176 = pneg %p107
        $region22: #{tpu_custom_call.1} parent=11 // pred_check_branch
          %178 = sbr.rel (%p176) target = $region24
        $region23: #{tpu_custom_call.1} parent=11 // pred_region
          %180 = vsyncadd [#allocation9], 0
          %s181 = sshll.u32 %s3, 4
          %s182 = int_to_ptr.hbm [resolvable:$true] %s181
          %s183 = sshll.u32 [#allocation8], 4
          %s184 = int_to_ptr.vmem [resolvable:$true] %s183
          %189 = dma.hbm_to_vmem [thread:$0]  %s182, 80, %s184, [#allocation9], 16, 16, 1
        $region24: #{tpu_custom_call.1} parent=11 // pred_fallthru
          _
      $region12: #{tpu_custom_call.1} parent=5 // pred_fallthru
        _
      %p190 = scmp.lt.s32.totalorder %s18, 8
      // Predicated region
      $region25: #{tpu_custom_call.1} parent=5 // pred_check
        %p191 = pneg %p190
      $region26: #{tpu_custom_call.1} parent=5 // pred_check_branch
        %193 = sbr.rel (%p191) target = $region28
      $region27: #{tpu_custom_call.1} parent=5 // pred_region
        // Predicated region
        $region29: #{tpu_custom_call.1} parent=27 // pred_check
          %p194 = pneg %p59
        $region30: #{tpu_custom_call.1} parent=27 // pred_check_branch
          %196 = sbr.rel (%p194) target = $region32
        $region31: #{tpu_custom_call.1} parent=27 // pred_region
          %s197 = sand.u32 %s18, 1
          %s198 = scalar_lea.sflag [#allocation6], %s197
          %s199 = sand.u32 %s49, 1
          %s200 = smul.addr %s199, 16
          %s201 = scalar_lea.vmem [#allocation5], %s200
          %203 = vsyncadd %s198, 0
          %s204 = smul.addr %s18, 2
          %s205 = smul.addr %s204, 8
          %s206 = scalar_lea.hbm %s1, %s205
          %s207 = sshll.u32 %s206, 4
          %s208 = int_to_ptr.hbm [resolvable:$true] %s207
          %s209 = sshll.u32 %s201, 4
          %s210 = int_to_ptr.vmem [resolvable:$true] %s209
          %215 = dma.hbm_to_vmem [thread:$0]  %s208, 256, %s210, %s198, 128, 128, 8
        $region32: #{tpu_custom_call.1} parent=27 // pred_fallthru
          _
      $region28: #{tpu_custom_call.1} parent=5 // pred_fallthru
        _
      %p216 = scmp.le.s32.totalorder 1, %s18
      %p217 = scmp.lt.s32.totalorder %s18, 9
      %p218 = pnand %p216, %p217
      %p219 = pneg %p218
      // Predicated region
      $region33: #{tpu_custom_call.1} parent=5 // pred_check
        _
      $region34: #{tpu_custom_call.1} parent=5 // pred_check_branch
        %221 = sbr.rel (%p218) target = $region36
      $region35: #{tpu_custom_call.1} parent=5 // pred_region
        %s222 = ssub.s32 %s18, 1
        // Predicated region
        $region37: #{tpu_custom_call.1} parent=35 // pred_check
          %p223 = pneg %p39
        $region38: #{tpu_custom_call.1} parent=35 // pred_check_branch
          %225 = sbr.rel (%p223) target = $region40
        $region39: #{tpu_custom_call.1} parent=35 // pred_region
          %227 = dma.done [#allocation3], 256
        $region40: #{tpu_custom_call.1} parent=35 // pred_fallthru
          _
        %s228 = sand.u32 %s23, 1
        %s229 = scalar_lea.sflag [#allocation6], %s228
        %s230 = sand.u32 %s52, 1
        %s231 = smul.addr %s230, 16
        %s232 = scalar_lea.vmem [#allocation5], %s231
        // Predicated region
        $region41: #{tpu_custom_call.1} parent=35 // pred_check
          %p233 = pneg %p65
        $region42: #{tpu_custom_call.1} parent=35 // pred_check_branch
          %235 = sbr.rel (%p233) target = $region44
        $region43: #{tpu_custom_call.1} parent=35 // pred_region
          %237 = dma.done %s229, 256
        $region44: #{tpu_custom_call.1} parent=35 // pred_fallthru
          _
        // Predicated region
        $region45: #{tpu_custom_call.1} parent=35 // pred_check
          %p238 = pneg %p86
        $region46: #{tpu_custom_call.1} parent=35 // pred_check_branch
          %240 = sbr.rel (%p238) target = $region48
        $region47: #{tpu_custom_call.1} parent=35 // pred_region
          %242 = dma.done [#allocation6], 3200
        $region48: #{tpu_custom_call.1} parent=35 // pred_fallthru
          _
        // Predicated region
        $region49: #{tpu_custom_call.1} parent=35 // pred_check
          %p243 = pneg %p107
        $region50: #{tpu_custom_call.1} parent=35 // pred_check_branch
          %245 = sbr.rel (%p243) target = $region52
        $region51: #{tpu_custom_call.1} parent=35 // pred_region
          %247 = dma.done [#allocation9], 80
        $region52: #{tpu_custom_call.1} parent=35 // pred_fallthru
          _
        %p248 = pneg %p39
        %p249 = pneg %p36
        %s250 = sand.u32 %s23, 1
        %s251 = scalar_lea.sflag [#allocation6], %s250
        %s252 = sand.u32 %s52, 1
        %s253 = smul.addr %s252, 16
        %s254 = scalar_lea.vmem [#allocation5], %s253
        %p255 = pneg %p65
        %p256 = pneg %p62
        %p257 = pneg %p86
        %p258 = pneg %p83
        %p259 = pneg %p107
        %p260 = pneg %p104
        %p261 = pneg %p133
        %p262 = pneg %p130
        %s263 = sand.u32 %s120, 1
        %s264 = scalar_lea.sflag [#allocation4], %s263
        %s265 = sand.u32 %s120, 1
        %s266 = smul.addr %s265, 16
        %s267 = scalar_lea.vmem [#allocation10], %s266
        %v269 = vld [vmem:[#allocation2] sm:$0xff]
        %v270 = vld [vmem:[#allocation2 + $0x8] sm:$0xff]
        %v271 = vld [vmem:[%s232] sm:$0xff]
        %v272 = vld [vmem:[%s232 + $0x8] sm:$0xff]
        %vm273 = vcmask 130048
        %v275 = vsel %vm273, %v269, 0
        %v278 = vsel %vm273, %v270, 0
        %280 = vmatpush.msra.mxu0 0.0
        %281 = vmatpush.msra.mxu0 0.0
        %282 = vmatpush.msra.mxu0 0.0
        %283 = vmatpush.msra.mxu0 0.0
        %284 = vmatpush.msra.mxu0 0.0
        %285 = vmatpush.msra.mxu0 0.0
        %286 = vmatpush.msra.mxu0 0.0
        %287 = vmatpush.msra.mxu0 0.0
        %288 = vmatpush.msra.mxu0 0.0
        %289 = vmatpush.msra.mxu0 0.0
        %290 = vmatpush.msra.mxu0 0.0
        %291 = vmatpush.msra.mxu0 0.0
        %292 = vmatpush.msra.mxu0 0.0
        %293 = vmatpush.msra.mxu0 0.0
        %294 = vmatpush.msra.mxu0 %v272
        %295 = vmatpush.msra.mxu0 %v271
        %296 = vmatmul.f32.gmra.mxu0 %v275
        %v297 = vpop.f32.mrf.mxu0
        %v298 = vadd.f32 0.0, %v297
        %299 = vmatmul.f32.gmra.mxu0 %v278
        %v300 = vpop.f32.mrf.mxu0
        %v301 = vadd.f32 0.0, %v300
        %302 = vdwg.mxu0
        %v303 = vld [vmem:[#allocation7] sm:$0xf]
        %v304 = vld [vmem:[#allocation7 + $0x4] sm:$0xf]
        %v305 = vpack.c.bf16 %v301, %v298
        %v306 = vld [vmem:[#allocation8] sm:$0x1]
        %v308 = vperm.slane %v306, 0
        %v312 = vunpack.c.l.b16 %v303
        %v313 = vunpack.c.l.b16 %v304
        %v314 = vpack.c.b16 %v313, %v312
        %v317 = vsel %vm273, %v305, 0
        %319 = vmatpush.bf16.msra.mxu0 0
        %320 = vmatpush.bf16.msra.mxu0 0
        %321 = vmatpush.bf16.msra.mxu0 0
        %322 = vmatpush.bf16.msra.mxu0 0
        %323 = vmatpush.bf16.msra.mxu0 0
        %324 = vmatpush.bf16.msra.mxu0 0
        %325 = vmatpush.bf16.msra.mxu0 0
        %326 = vmatpush.bf16.msra.mxu0 %v314
        %327 = vmatmul.bf16.gmra.mxu0 %v317
        %v328 = vpop.f32.mrf.mxu0
        %v329 = vadd.f32 %v308, %v328
        %v330 = vpop.f32.mrf.mxu0
        %v331 = vadd.f32 %v308, %v330
        %332 = vdwg.mxu0
        %v333 = vmax.f32 %v329, 0.0
        %v334 = vmax.f32 %v331, 0.0
        %335 = vmatpush.msra.mxu0 0.0
        %336 = vmatpush.msra.mxu0 0.0
        %337 = vmatpush.msra.mxu0 0.0
        %338 = vmatpush.msra.mxu0 0.0
        %339 = vmatpush.msra.mxu0 0.0
        %340 = vmatpush.msra.mxu0 0.0
        %341 = vmatpush.msra.mxu0 0.0
        %342 = vmatpush.msra.mxu0 0.0
        %343 = vmatpush.msra.mxu0 0.0
        %344 = vmatpush.msra.mxu0 0.0
        %345 = vmatpush.msra.mxu0 0.0
        %346 = vmatpush.msra.mxu0 0.0
        %347 = vmatpush.msra.mxu0 0.0
        %348 = vmatpush.msra.mxu0 0.0
        %349 = vmatpush.msra.mxu0 %v334
        %350 = vmatpush.msra.mxu0 %v333
        %351 = vmatmul.f32.gmra.mxu0 %v275
        %v352 = vpop.f32.mrf.mxu0
        %v353 = vadd.f32 0.0, %v352
        %354 = vmatmul.f32.gmra.mxu0 %v278
        %v355 = vpop.f32.mrf.mxu0
        %v356 = vadd.f32 0.0, %v355
        %357 = vdwg.mxu0
        %v358 = vld [vmem:[#allocation7 + $0x8] sm:$0xf]
        %v359 = vld [vmem:[#allocation7 + $0xc] sm:$0xf]
        %v360 = vld [vmem:[#allocation7 + $0x10] sm:$0xf]
        %v361 = vld [vmem:[#allocation7 + $0x14] sm:$0xf]
        %v362 = vld [vmem:[#allocation7 + $0x18] sm:$0xf]
        %v363 = vld [vmem:[#allocation7 + $0x1c] sm:$0xf]
        %v364 = vld [vmem:[#allocation7 + $0x20] sm:$0xf]
        %v365 = vld [vmem:[#allocation7 + $0x24] sm:$0xf]
        %v366 = vpack.c.bf16 %v356, %v353
        %s367 = scalar_lea.vmem [#allocation8], 1
        %v368 = vld [vmem:[%s367] sm:$0x1]
        %v370 = vperm.slane %v368, 0
        %v380 = vunpack.c.l.b16 %v358
        %v381 = vunpack.c.l.b16 %v359
        %v382 = vunpack.c.l.b16 %v360
        %v383 = vunpack.c.l.b16 %v361
        %v384 = vunpack.c.l.b16 %v362
        %v385 = vunpack.c.l.b16 %v363
        %v386 = vunpack.c.l.b16 %v364
        %v387 = vunpack.c.l.b16 %v365
        %v388 = vpack.c.b16 %v381, %v380
        %v389 = vpack.c.b16 %v383, %v382
        %v390 = vpack.c.b16 %v385, %v384
        %v391 = vpack.c.b16 %v387, %v386
        %vm396 = vcmask 523264
        %v398 = vsel %vm396, %v366, 0
        %400 = vmatpush.bf16.msra.mxu0 0
        %401 = vmatpush.bf16.msra.mxu0 0
        %402 = vmatpush.bf16.msra.mxu0 0
        %403 = vmatpush.bf16.msra.mxu0 0
        %404 = vmatpush.bf16.msra.mxu0 %v391
        %405 = vmatpush.bf16.msra.mxu0 %v390
        %406 = vmatpush.bf16.msra.mxu0 %v389
        %407 = vmatpush.bf16.msra.mxu0 %v388
        %408 = vmatmul.bf16.gmra.mxu0 %v398
        %v409 = vpop.f32.mrf.mxu0
        %v410 = vadd.f32 %v370, %v409
        %v411 = vpop.f32.mrf.mxu0
        %v412 = vadd.f32 %v370, %v411
        %413 = vdwg.mxu0
        %v414 = vmax.f32 %v410, 0.0
        %v415 = vmax.f32 %v412, 0.0
        %416 = vmatpush.msra.mxu0 0.0
        %417 = vmatpush.msra.mxu0 0.0
        %418 = vmatpush.msra.mxu0 0.0
        %419 = vmatpush.msra.mxu0 0.0
        %420 = vmatpush.msra.mxu0 0.0
        %421 = vmatpush.msra.mxu0 0.0
        %422 = vmatpush.msra.mxu0 0.0
        %423 = vmatpush.msra.mxu0 0.0
        %424 = vmatpush.msra.mxu0 0.0
        %425 = vmatpush.msra.mxu0 0.0
        %426 = vmatpush.msra.mxu0 0.0
        %427 = vmatpush.msra.mxu0 0.0
        %428 = vmatpush.msra.mxu0 0.0
        %429 = vmatpush.msra.mxu0 0.0
        %430 = vmatpush.msra.mxu0 %v415
        %431 = vmatpush.msra.mxu0 %v414
        %432 = vmatmul.f32.gmra.mxu0 %v275
        %v433 = vpop.f32.mrf.mxu0
        %v434 = vadd.f32 0.0, %v433
        %435 = vmatmul.f32.gmra.mxu0 %v278
        %v436 = vpop.f32.mrf.mxu0
        %v437 = vadd.f32 0.0, %v436
        %438 = vdwg.mxu0
        %v439 = vld [vmem:[#allocation7 + $0x28] sm:$0xf]
        %v440 = vld [vmem:[#allocation7 + $0x2c] sm:$0xf]
        %v441 = vld [vmem:[#allocation7 + $0x30] sm:$0xf]
        %v442 = vld [vmem:[#allocation7 + $0x34] sm:$0xf]
        %v443 = vld [vmem:[#allocation7 + $0x38] sm:$0xf]
        %v444 = vld [vmem:[#allocation7 + $0x3c] sm:$0xf]
        %v445 = vld [vmem:[#allocation7 + $0x40] sm:$0xf]
        %v446 = vld [vmem:[#allocation7 + $0x44] sm:$0xf]
        %v447 = vld [vmem:[#allocation7 + $0x48] sm:$0xf]
        %v448 = vld [vmem:[#allocation7 + $0x4c] sm:$0xf]
        %v449 = vld [vmem:[#allocation7 + $0x50] sm:$0xf]
        %v450 = vld [vmem:[#allocation7 + $0x54] sm:$0xf]
        %v451 = vld [vmem:[#allocation7 + $0x58] sm:$0xf]
        %v452 = vld [vmem:[#allocation7 + $0x5c] sm:$0xf]
        %v453 = vld [vmem:[#allocation7 + $0x60] sm:$0xf]
        %v454 = vld [vmem:[#allocation7 + $0x64] sm:$0xf]
        %v455 = vpack.c.bf16 %v437, %v434
        %s456 = scalar_lea.vmem [#allocation8], 2
        %v457 = vld [vmem:[%s456] sm:$0x1]
        %v459 = vperm.slane %v457, 0
        %v477 = vunpack.c.l.b16 %v439
        %v478 = vunpack.c.l.b16 %v440
        %v479 = vunpack.c.l.b16 %v441
        %v480 = vunpack.c.l.b16 %v442
        %v481 = vunpack.c.l.b16 %v443
        %v482 = vunpack.c.l.b16 %v444
        %v483 = vunpack.c.l.b16 %v445
        %v484 = vunpack.c.l.b16 %v446
        %v485 = vunpack.c.l.b16 %v447
        %v486 = vunpack.c.l.b16 %v448
        %v487 = vunpack.c.l.b16 %v449
        %v488 = vunpack.c.l.b16 %v450
        %v489 = vunpack.c.l.b16 %v451
        %v490 = vunpack.c.l.b16 %v452
        %v491 = vunpack.c.l.b16 %v453
        %v492 = vunpack.c.l.b16 %v454
        %v493 = vpack.c.b16 %v478, %v477
        %v494 = vpack.c.b16 %v480, %v479
        %v495 = vpack.c.b16 %v482, %v481
        %v496 = vpack.c.b16 %v484, %v483
        %v497 = vpack.c.b16 %v486, %v485
        %v498 = vpack.c.b16 %v488, %v487
        %v499 = vpack.c.b16 %v490, %v489
        %v500 = vpack.c.b16 %v492, %v491
        %509 = vmatpush.bf16.msra.mxu0 %v500
        %510 = vmatpush.bf16.msra.mxu0 %v499
        %511 = vmatpush.bf16.msra.mxu0 %v498
        %512 = vmatpush.bf16.msra.mxu0 %v497
        %513 = vmatpush.bf16.msra.mxu0 %v496
        %514 = vmatpush.bf16.msra.mxu0 %v495
        %515 = vmatpush.bf16.msra.mxu0 %v494
        %516 = vmatpush.bf16.msra.mxu0 %v493
        %517 = vmatmul.bf16.gmra.mxu0 %v455
        %v518 = vpop.f32.mrf.mxu0
        %v519 = vadd.f32 %v459, %v518
        %v520 = vpop.f32.mrf.mxu0
        %v521 = vadd.f32 %v459, %v520
        %522 = vdwg.mxu0
        %v523 = vmax.f32 %v519, 0.0
        %v524 = vmax.f32 %v521, 0.0
        %v525 = vld [vmem:[#allocation7 + $0x68] sm:$0xf]
        %v526 = vld [vmem:[#allocation7 + $0x6c] sm:$0xf]
        %v527 = vld [vmem:[#allocation7 + $0x70] sm:$0xf]
        %v528 = vld [vmem:[#allocation7 + $0x74] sm:$0xf]
        %v529 = vld [vmem:[#allocation7 + $0x78] sm:$0xf]
        %v530 = vld [vmem:[#allocation7 + $0x7c] sm:$0xf]
        %v531 = vld [vmem:[#allocation7 + $0x80] sm:$0xf]
        %v532 = vld [vmem:[#allocation7 + $0x84] sm:$0xf]
        %v533 = vld [vmem:[#allocation7 + $0x88] sm:$0xf]
        %v534 = vld [vmem:[#allocation7 + $0x8c] sm:$0xf]
        %v535 = vld [vmem:[#allocation7 + $0x90] sm:$0xf]
        %v536 = vld [vmem:[#allocation7 + $0x94] sm:$0xf]
        %v537 = vld [vmem:[#allocation7 + $0x98] sm:$0xf]
        %v538 = vld [vmem:[#allocation7 + $0x9c] sm:$0xf]
        %v539 = vld [vmem:[#allocation7 + $0xa0] sm:$0xf]
        %v540 = vld [vmem:[#allocation7 + $0xa4] sm:$0xf]
        %v541 = vpack.c.bf16 %v524, %v523
        %s542 = scalar_lea.vmem [#allocation8], 3
        %v543 = vld [vmem:[%s542] sm:$0x1]
        %v545 = vperm.slane %v543, 0
        %v563 = vunpack.c.l.b16 %v525
        %v564 = vunpack.c.l.b16 %v526
        %v565 = vunpack.c.l.b16 %v527
        %v566 = vunpack.c.l.b16 %v528
        %v567 = vunpack.c.l.b16 %v529
        %v568 = vunpack.c.l.b16 %v530
        %v569 = vunpack.c.l.b16 %v531
        %v570 = vunpack.c.l.b16 %v532
        %v571 = vunpack.c.l.b16 %v533
        %v572 = vunpack.c.l.b16 %v534
        %v573 = vunpack.c.l.b16 %v535
        %v574 = vunpack.c.l.b16 %v536
        %v575 = vunpack.c.l.b16 %v537
        %v576 = vunpack.c.l.b16 %v538
        %v577 = vunpack.c.l.b16 %v539
        %v578 = vunpack.c.l.b16 %v540
        %v579 = vpack.c.b16 %v564, %v563
        %v580 = vpack.c.b16 %v566, %v565
        %v581 = vpack.c.b16 %v568, %v567
        %v582 = vpack.c.b16 %v570, %v569
        %v583 = vpack.c.b16 %v572, %v571
        %v584 = vpack.c.b16 %v574, %v573
        %v585 = vpack.c.b16 %v576, %v575
        %v586 = vpack.c.b16 %v578, %v577
        %595 = vmatpush.bf16.msra.mxu0 %v586
        %596 = vmatpush.bf16.msra.mxu0 %v585
        %597 = vmatpush.bf16.msra.mxu0 %v584
        %598 = vmatpush.bf16.msra.mxu0 %v583
        %599 = vmatpush.bf16.msra.mxu0 %v582
        %600 = vmatpush.bf16.msra.mxu0 %v581
        %601 = vmatpush.bf16.msra.mxu0 %v580
        %602 = vmatpush.bf16.msra.mxu0 %v579
        %603 = vmatmul.bf16.gmra.mxu0 %v541
        %v604 = vpop.f32.mrf.mxu0
        %v605 = vadd.f32 %v545, %v604
        %v606 = vpop.f32.mrf.mxu0
        %v607 = vadd.f32 %v545, %v606
        %608 = vdwg.mxu0
        %v609 = vmax.f32 %v605, 0.0
        %v610 = vmax.f32 %v607, 0.0
        %v611 = vld [vmem:[#allocation7 + $0xa8] sm:$0xf]
        %v612 = vld [vmem:[#allocation7 + $0xac] sm:$0xf]
        %v613 = vld [vmem:[#allocation7 + $0xb0] sm:$0xf]
        %v614 = vld [vmem:[#allocation7 + $0xb4] sm:$0xf]
        %v615 = vld [vmem:[#allocation7 + $0xb8] sm:$0xf]
        %v616 = vld [vmem:[#allocation7 + $0xbc] sm:$0xf]
        %v617 = vld [vmem:[#allocation7 + $0xc0] sm:$0xf]
        %v618 = vld [vmem:[#allocation7 + $0xc4] sm:$0xf]
        %v619 = vpack.c.bf16 %v610, %v609
        %s620 = scalar_lea.vmem [#allocation8], 4
        %v621 = vld [vmem:[%s620] sm:$0x1]
        %v623 = vperm.slane %v621, 0
        %v633 = vunpack.c.l.b16 %v611
        %v634 = vunpack.c.l.b16 %v612
        %v635 = vunpack.c.l.b16 %v613
        %v636 = vunpack.c.l.b16 %v614
        %v637 = vunpack.c.l.b16 %v615
        %v638 = vunpack.c.l.b16 %v616
        %v639 = vunpack.c.l.b16 %v617
        %v640 = vunpack.c.l.b16 %v618
        %v641 = vpack.c.b16 %v634, %v633
        %v642 = vpack.c.b16 %v636, %v635
        %v643 = vpack.c.b16 %v638, %v637
        %v644 = vpack.c.b16 %v640, %v639
        %v650 = vsel %vm396, %v619, 0
        %652 = vmatpush.bf16.msra.mxu0 0
        %653 = vmatpush.bf16.msra.mxu0 0
        %654 = vmatpush.bf16.msra.mxu0 0
        %655 = vmatpush.bf16.msra.mxu0 0
        %656 = vmatpush.bf16.msra.mxu0 %v644
        %657 = vmatpush.bf16.msra.mxu0 %v643
        %658 = vmatpush.bf16.msra.mxu0 %v642
        %659 = vmatpush.bf16.msra.mxu0 %v641
        %660 = vmatmul.bf16.gmra.mxu0 %v650
        %v661 = vpop.f32.mrf.mxu0
        %v662 = vadd.f32 %v623, %v661
        %v663 = vpop.f32.mrf.mxu0
        %v664 = vadd.f32 %v623, %v663
        %665 = vdwg.mxu0
        %666 = vst [vmem:[%s267] sm:$0xff] %v662
        %667 = vst [vmem:[%s267 + $0x8] sm:$0xff] %v664
        %s668 = sand.u32 %s120, 1
        %s669 = scalar_lea.sflag [#allocation4], %s668
        %s670 = sand.u32 %s120, 1
        %s671 = smul.addr %s670, 16
        %s672 = scalar_lea.vmem [#allocation10], %s671
        // Predicated region
        $region53: #{tpu_custom_call.1} parent=35 // pred_check
          %p673 = pneg %p130
        $region54: #{tpu_custom_call.1} parent=35 // pred_check_branch
          %675 = sbr.rel (%p673) target = $region56
        $region55: #{tpu_custom_call.1} parent=35 // pred_region
          %677 = vsyncadd %s669, 0
          %s678 = smul.addr %s23, 2
          %s679 = smul.addr %s678, 8
          %s680 = scalar_lea.hbm %s4, %s679
          %s681 = sshll.u32 %s672, 4
          %s682 = int_to_ptr.vmem [resolvable:$true] %s681
          %s683 = sshll.u32 %s680, 4
          %s684 = int_to_ptr.hbm [resolvable:$true] %s683
          %689 = dma.vmem_to_hbm [thread:$0]  %s682, 256, %s684, %s669, 128, 128, 8
        $region56: #{tpu_custom_call.1} parent=35 // pred_fallthru
          _
      $region36: #{tpu_custom_call.1} parent=5 // pred_fallthru
        _
      %p690 = scmp.le.s32.totalorder 2, %s18
      // Predicated region
      $region57: #{tpu_custom_call.1} parent=5 // pred_check
        %p691 = pneg %p690
      $region58: #{tpu_custom_call.1} parent=5 // pred_check_branch
        %693 = sbr.rel (%p691) target = $region60
      $region59: #{tpu_custom_call.1} parent=5 // pred_region
        %s694 = ssub.s32 %s18, 2
        // Predicated region
        $region61: #{tpu_custom_call.1} parent=59 // pred_check
          %p695 = pneg %p136
        $region62: #{tpu_custom_call.1} parent=59 // pred_check_branch
          %697 = sbr.rel (%p695) target = $region64
        $region63: #{tpu_custom_call.1} parent=59 // pred_region
          %s698 = sand.u32 %s121, 1
          %s699 = scalar_lea.sflag [#allocation4], %s698
          %s700 = sand.u32 %s121, 1
          %s701 = smul.addr %s700, 16
          %s702 = scalar_lea.vmem [#allocation10], %s701
          %704 = dma.done %s699, 256
        $region64: #{tpu_custom_call.1} parent=59 // pred_fallthru
          _
      $region60: #{tpu_custom_call.1} parent=5 // pred_fallthru
        _
    $region6: #{tpu_custom_call.1} parent=1 // loop_footer
      %s22 = sadd.s32 1, %s18
    $region7: #{tpu_custom_call.1} parent=1 // loop_footer_branch
      %17 = sbr.rel target = $region3
    $region8: #{tpu_custom_call.1} parent=1 // loop_exit
      _
    %705 = vsyncpa [#allocation3], 1
    %s706 = scalar_lea.sflag [#allocation3], 1
    %707 = vsyncpa %s706, 1
    %708 = vsyncpa [#allocation6], 1
    %s709 = scalar_lea.sflag [#allocation6], 1
    %710 = vsyncpa %s709, 1
    %711 = vsyncpa [#allocation9], 1
    %712 = vsyncpa [#allocation4], 1
    %s713 = scalar_lea.sflag [#allocation4], 1
    %714 = vsyncpa %s713, 1

</llo_original>
